<compile_context>
chip_gen: v5e
topology: v5e:2x2
jax: 0.10.0
libtpu: 0.0.40
codegen_flags: <defaults>
</compile_context>

<pallas_src>
import functools

import jax
import jax.numpy as jnp
from jax.experimental import pallas as pl
from jax.experimental.pallas import tpu as pltpu


def _round_up(n, m):
    return ((n + m - 1) // m) * m


def simple_model_kernel(x_ref, w1_ref, b1_ref, w23_ref, b23_ref, o_ref):
    x = x_ref[...]

    # 'in'  : Linear(in_feat -> mid_p)   (MXU, f32 accumulate)
    h = jnp.dot(x, w1_ref[...], preferred_element_type=jnp.float32) + b1_ref[...]
    # 'act1': ReLU
    h = jnp.maximum(h, 0.0)
    # 'mid0' + 'out' folded offline into one Linear(mid_p -> out_feat)
    logits = (jnp.dot(h.astype(w23_ref.dtype), w23_ref[...],
                      preferred_element_type=jnp.float32) + b23_ref[...])

    # 'act3': Softmax over dim=1 (numerically stable, exact divide).
    m = jnp.max(logits, axis=-1, keepdims=True)
    e = jnp.exp(logits - m)
    denom = jnp.sum(e, axis=-1, keepdims=True)
    o_ref[...] = (e / denom).astype(o_ref.dtype)


def simple_model_forward(x, params, *, block_rows=2048):
    """x: (batch, in_feat). params: padded / pre-folded weights from init_params."""
    w1, b1, w23, b23 = params["w1"], params["b1"], params["w23"], params["b23"]
    batch, in_feat = x.shape
    mid_p = w1.shape[1]
    out_feat = w23.shape[1]

    # Matched matmul operand dtypes (bf16 params => bf16 x; accumulation is f32).
    if x.dtype != w1.dtype:
        x = x.astype(w1.dtype)

    # Large row tiles amortize per-step overhead, but guarantee >= 2 grid steps
    # when batch allows it so both v7x TensorCores get work.
    tm = min(block_rows, batch)
    if batch > 8:
        tm = min(tm, _round_up(pl.cdiv(batch, 2), 8))
    grid = (pl.cdiv(batch, tm),)

    def resident(shape):   # weights/biases: same block every grid step (stay in VMEM)
        return pl.BlockSpec(shape, lambda i: (0, 0))

    itemsize = jnp.dtype(x.dtype).itemsize
    flops = 2 * batch * (in_feat * mid_p + mid_p * out_feat)
    bytes_accessed = (batch * in_feat * itemsize            # x in
                      + batch * out_feat * 4                # out (f32)
                      + (in_feat * mid_p + mid_p * out_feat) * itemsize
                      + (mid_p + out_feat) * 4)             # biases (f32)
    cost = pl.CostEstimate(flops=flops,
                           transcendentals=batch * out_feat,
                           bytes_accessed=bytes_accessed)

    return pl.pallas_call(
        simple_model_kernel,
        out_shape=jax.ShapeDtypeStruct((batch, out_feat), jnp.float32),
        grid=grid,
        in_specs=[pl.BlockSpec((tm, in_feat), lambda i: (i, 0)),
                  resident(w1.shape), resident(b1.shape),
                  resident(w23.shape), resident(b23.shape)],
        out_specs=pl.BlockSpec((tm, out_feat), lambda i: (i, 0)),
        compiler_params=pltpu.CompilerParams(
            dimension_semantics=("parallel",)),   # megacore / v7x: split batch tiles
        cost_estimate=cost,
    )(x, w1, b1, w23, b23)


def init_params(key, in_feat, out_feat, mid=100, dtype=jnp.float32):
    """nn.Linear-style U(-1/sqrt(fan_in), +bound) init.

    Kernel parameters are stored transposed (fan_in, fan_out); the hidden dim is
    zero-padded 100 -> 128 for the MXU K dimension; the 'mid0' and 'out' Linears
    are folded into a single (w23, b23) pair.  Unfolded/unpadded copies are kept
    under "ref" for the pure-JAX reference.
    """
    mid_p = _round_up(mid, 128)
    ks = jax.random.split(key, 6)

    def linear(kw, kb, fan_in, fan_out):
        bound = 1.0 / float(fan_in) ** 0.5
        w = jax.random.uniform(kw, (fan_in, fan_out), jnp.float32, -bound, bound)
        b = jax.random.uniform(kb, (fan_out,), jnp.float32, -bound, bound)
        return w, b

    w1, b1 = linear(ks[0], ks[1], in_feat, mid)        # 'in'
    w2, b2 = linear(ks[2], ks[3], mid, out_feat)       # 'mid0'
    w3, b3 = linear(ks[4], ks[5], out_feat, out_feat)  # 'out'

    # Fold the two consecutive Linears (no activation in between).
    w23 = w2 @ w3                       # (mid, out_feat)
    b23 = b2 @ w3 + b3                  # (out_feat,)

    # Pad hidden dim to 128 (zero rows/cols -> padded hidden units contribute 0).
    w1_p = jnp.zeros((in_feat, mid_p), jnp.float32).at[:, :mid].set(w1)
    b1_p = jnp.zeros((1, mid_p), jnp.float32).at[:, :mid].set(b1)
    w23_p = jnp.zeros((mid_p, out_feat), jnp.float32).at[:mid, :].set(w23)
    b23_p = b23.reshape(1, out_feat)

    return {
        "w1": w1_p.astype(dtype), "b1": b1_p,           # biases stay f32
        "w23": w23_p.astype(dtype), "b23": b23_p,
        "ref": {"w1": w1, "b1": b1, "w2": w2, "b2": b2, "w3": w3, "b3": b3},
    }


def reference_forward(x, params):
    """Pure-JAX reference matching the original module layer-by-layer."""
    r = params["ref"]
    h = jnp.maximum(x.astype(jnp.float32) @ r["w1"] + r["b1"], 0.0)   # 'in' + 'act1'
    h = h @ r["w2"] + r["b2"]                                         # 'mid0'
    h = h @ r["w3"] + r["b3"]                                         # 'out'
    return jax.nn.softmax(h, axis=-1)                                 # 'act3'


if __name__ == "__main__":
    batch, in_feat, out_feat, mid = 256, 32, 16, 100

    key = jax.random.PRNGKey(0)
    kx, kp = jax.random.split(key)
    x = jax.random.normal(kx, (batch, in_feat), jnp.float32)
    params = init_params(kp, in_feat, out_feat, mid)

    out = simple_model_forward(x, params)       # default tiling -> grid=(2,)
    out = jax.block_until_ready(out)

    ref = reference_forward(x, params)
    assert out.shape == (batch, out_feat)
    assert jnp.allclose(out, ref, atol=5e-5, rtol=5e-5)
    assert jnp.allclose(jnp.sum(out, axis=-1), 1.0, atol=1e-5)

    print("KERNEL_OK")
</pallas_src>

<mosaic_0001>
module attributes {stable_mosaic.version = 11 : i64} {
  func.func @simple_model_kernel(%arg0: i32, %arg1: memref<128x32xf32, #tpu.memory_space<vmem>>, %arg2: memref<32x128xf32, #tpu.memory_space<vmem>>, %arg3: memref<1x128xf32, #tpu.memory_space<vmem>>, %arg4: memref<128x16xf32, #tpu.memory_space<vmem>>, %arg5: memref<1x16xf32, #tpu.memory_space<vmem>>, %arg6: memref<128x16xf32, #tpu.memory_space<vmem>>) attributes {dimension_semantics = [#tpu.dimension_semantics<parallel>], iteration_bounds = array<i64: 2>, scalar_prefetch = 0 : i64, scratch_operands = 0 : i64, tpu.core_type = #tpu.core_type<tc>, window_params = [{transform_indices = @transform_0, window_bounds = array<i64: 128, 32>}, {pipeline_mode = #tpu.pipeline_mode<synchronous>, transform_indices = @transform_1, window_bounds = array<i64: 32, 128>}, {pipeline_mode = #tpu.pipeline_mode<synchronous>, transform_indices = @transform_2, window_bounds = array<i64: 1, 128>}, {pipeline_mode = #tpu.pipeline_mode<synchronous>, transform_indices = @transform_3, window_bounds = array<i64: 128, 16>}, {pipeline_mode = #tpu.pipeline_mode<synchronous>, transform_indices = @transform_4, window_bounds = array<i64: 1, 16>}, {transform_indices = @transform_5, window_bounds = array<i64: 128, 16>}]} {
    %c0 = arith.constant 0 : index
    %c0_0 = arith.constant 0 : index
    %0 = vector.load %arg1[%c0, %c0_0] : memref<128x32xf32, #tpu.memory_space<vmem>>, vector<128x32xf32>
    %c0_1 = arith.constant 0 : index
    %c0_2 = arith.constant 0 : index
    %1 = vector.load %arg2[%c0_1, %c0_2] : memref<32x128xf32, #tpu.memory_space<vmem>>, vector<32x128xf32>
    %cst = arith.constant dense<0.000000e+00> : vector<128x128xf32>
    %2 = tpu.matmul %0, %1, %cst {dimension_numbers = #tpu.dot_dimension_numbers<[1], [0], [0], [1], [0, 0, 1, 1], [], []>} : vector<128x32xf32>, vector<32x128xf32>, vector<128x128xf32> -> vector<128x128xf32>
    %c0_3 = arith.constant 0 : index
    %c0_4 = arith.constant 0 : index
    %3 = vector.load %arg3[%c0_3, %c0_4] : memref<1x128xf32, #tpu.memory_space<vmem>>, vector<1x128xf32>
    %4 = vector.broadcast %3 : vector<1x128xf32> to vector<128x128xf32>
    %5 = arith.addf %2, %4 : vector<128x128xf32>
    %cst_5 = arith.constant 0.000000e+00 : f32
    %6 = vector.broadcast %cst_5 : f32 to vector<128x128xf32>
    %7 = arith.maximumf %5, %6 : vector<128x128xf32>
    %c0_6 = arith.constant 0 : index
    %c0_7 = arith.constant 0 : index
    %8 = vector.load %arg4[%c0_6, %c0_7] : memref<128x16xf32, #tpu.memory_space<vmem>>, vector<128x16xf32>
    %cst_8 = arith.constant dense<0.000000e+00> : vector<128x16xf32>
    %9 = tpu.matmul %7, %8, %cst_8 {dimension_numbers = #tpu.dot_dimension_numbers<[1], [0], [0], [1], [0, 0, 1, 1], [], []>} : vector<128x128xf32>, vector<128x16xf32>, vector<128x16xf32> -> vector<128x16xf32>
    %c0_9 = arith.constant 0 : index
    %c0_10 = arith.constant 0 : index
    %10 = vector.load %arg5[%c0_9, %c0_10] : memref<1x16xf32, #tpu.memory_space<vmem>>, vector<1x16xf32>
    %11 = vector.broadcast %10 : vector<1x16xf32> to vector<128x16xf32>
    %12 = arith.addf %9, %11 : vector<128x16xf32>
    %cst_11 = arith.constant dense<0xFF800000> : vector<128xf32>
    %13 = vector.multi_reduction <maximumf>, %12, %cst_11 [1] : vector<128x16xf32> to vector<128xf32>
    %14 = vector.shape_cast %13 : vector<128xf32> to vector<128x1xf32>
    %15 = vector.broadcast %14 : vector<128x1xf32> to vector<128x16xf32>
    %16 = arith.subf %12, %15 : vector<128x16xf32>
    %17 = math.exp %16 : vector<128x16xf32>
    %cst_12 = arith.constant dense<0.000000e+00> : vector<128xf32>
    %18 = vector.multi_reduction <add>, %17, %cst_12 [1] : vector<128x16xf32> to vector<128xf32>
    %19 = vector.shape_cast %18 : vector<128xf32> to vector<128x1xf32>
    %20 = vector.broadcast %19 : vector<128x1xf32> to vector<128x16xf32>
    %21 = arith.divf %17, %20 : vector<128x16xf32>
    %c0_13 = arith.constant 0 : index
    %c0_14 = arith.constant 0 : index
    %22 = vector.load %arg6[%c0_13, %c0_14] : memref<128x16xf32, #tpu.memory_space<vmem>>, vector<128x16xf32>
    tpu.vector_store %arg6[%c0_13, %c0_14], %21 {strides = array<i32>} : memref<128x16xf32, #tpu.memory_space<vmem>>, vector<128x16xf32>,
    return
  }
  func.func @transform_0(%arg0: i32) -> (i32, i32) {
    %c0_i32 = arith.constant 0 : i32
    %c0_i32_0 = arith.constant 0 : i32
    return %arg0, %c0_i32 : i32, i32
  }
  func.func @transform_1(%arg0: i32) -> (i32, i32) {
    %c0_i32 = arith.constant 0 : i32
    %c0_i32_0 = arith.constant 0 : i32
    %c0_i32_1 = arith.constant 0 : i32
    return %c0_i32, %c0_i32_0 : i32, i32
  }
  func.func @transform_2(%arg0: i32) -> (i32, i32) {
    %c0_i32 = arith.constant 0 : i32
    %c0_i32_0 = arith.constant 0 : i32
    %c0_i32_1 = arith.constant 0 : i32
    return %c0_i32, %c0_i32_0 : i32, i32
  }
  func.func @transform_3(%arg0: i32) -> (i32, i32) {
    %c0_i32 = arith.constant 0 : i32
    %c0_i32_0 = arith.constant 0 : i32
    %c0_i32_1 = arith.constant 0 : i32
    return %c0_i32, %c0_i32_0 : i32, i32
  }
  func.func @transform_4(%arg0: i32) -> (i32, i32) {
    %c0_i32 = arith.constant 0 : i32
    %c0_i32_0 = arith.constant 0 : i32
    %c0_i32_1 = arith.constant 0 : i32
    return %c0_i32, %c0_i32_0 : i32, i32
  }
  func.func @transform_5(%arg0: i32) -> (i32, i32) {
    %c0_i32 = arith.constant 0 : i32
    %c0_i32_0 = arith.constant 0 : i32
    return %arg0, %c0_i32 : i32, i32
  }
}

</mosaic_0001>

<llo_original>
// kernel: tpu_custom_call.1
$region0: #{tpu_custom_call.1}
  #allocation0 [shape = 'u32[]', space=smem, size = 0x4, offset = 0x4, fixed_abs, tag = 'smem constant byte address 0x4 - core index']
  #allocation1 [shape = 'u32[72,128]{1,0:T(1,128)}', space=vmem, size = 0x9000, scoped, tag = 'internal scratch']
  %s0 = inlined_call_operand.vmem [shape: f32[256,32], index: 0, kind: input, shape index: {}]
  %s1 = inlined_call_operand.vmem [shape: f32[32,128], index: 1, kind: input, shape index: {}]
  %s2 = inlined_call_operand.vmem [shape: f32[1,128], index: 2, kind: input, shape index: {}]
  %s3 = inlined_call_operand.vmem [shape: f32[128,16], index: 3, kind: input, shape index: {}]
  %s4 = inlined_call_operand.vmem [shape: f32[1,16], index: 4, kind: input, shape index: {}]
  %s5 = inlined_call_operand.vmem [shape: f32[256,16], index: 5, kind: output, shape index: {}]
  %s6 = sld [smem:[#allocation0]]
  $region53: #{tpu_custom_call.1} parent=0
    _
  %s8 = ssub.s32 1, %s6
  %s9 = scalar_select 0, %s8, %s6
  loop: start=0, step=1, limit=4
  $region2: #{tpu_custom_call.1} parent=0 // loop_pre_header
    _
  $region3: #{tpu_custom_call.1} parent=0 // loop_header
    %s11 = sphi 0, %s15
    %p12 = scmp.ge.s32.totalorder %s11, 4
    %s21 = sphi 0, %s23
    %s24 = sphi 0, %s21
    %s25 = sphi 0, %s24
    %s41 = sphi 0, %s25
    %s45 = sphi 0, %s45
    %s47 = sphi 0, %s45
    %s48 = sphi 0, %s47
    %s62 = sphi 0, %s48
    %s66 = sphi 0, %s66
    %s68 = sphi 0, %s66
    %s69 = sphi 0, %s68
    %s83 = sphi 0, %s69
    %s87 = sphi 0, %s87
    %s89 = sphi 0, %s87
    %s90 = sphi 0, %s89
    %s104 = sphi 0, %s90
    %s108 = sphi 0, %s108
    %s110 = sphi 0, %s108
    %s111 = sphi 0, %s110
    %s125 = sphi 0, %s111
    %s131 = sphi 0, %s133
    %s134 = sphi 0, %s131
    %s135 = sphi 0, %s134
    %s151 = sphi 0, %s135
  $region4: #{tpu_custom_call.1} parent=0 // loop_header_branch
    %14 = sbr.rel (%p12) target = $region8
  $region5: #{tpu_custom_call.1} parent=0 // loop_body
    %s16 = ssub.s32 %s11, 1
    %s17 = ssub.s32 %s11, 2
    %s18 = sadd.s32 %s11, 1
    %s19 = ssub.s32 %s11, %s18
    %p20 = scmp.eq.s32.totalorder %s19, 0
    %s22 = sadd.s32 %s21, 1
    %s23 = scalar_select %p20, %s21, %s22
    %p26 = pneg %p20
    %p27 = scmp.eq.s32.totalorder %s11, 1
    %p28 = por %p26, %p27
    %p29 = scmp.ne.s32.totalorder %s21, %s24
    %p30 = scmp.eq.s32.totalorder %s11, 0
    %p31 = por %p29, %p30
    %p32 = scmp.ne.s32.totalorder %s21, %s24
    %p33 = scmp.eq.s32.totalorder %s16, 1
    %p34 = por %p32, %p33
    %p35 = scmp.ne.s32.totalorder %s24, %s25
    %p36 = scmp.eq.s32.totalorder %s16, 0
    %p37 = por %p35, %p36
    %p38 = scmp.ne.s32.totalorder %s24, %s25
    %p39 = scmp.eq.s32.totalorder %s17, 1
    %p40 = por %p38, %p39
    %p42 = scmp.ne.s32.totalorder %s25, %s41
    %p43 = scmp.eq.s32.totalorder %s17, 0
    %p44 = por %p42, %p43
    %s46 = sadd.s32 %s45, 1
    %p49 = scmp.eq.s32.totalorder %s11, 1
    %p50 = scmp.ne.s32.totalorder %s45, %s47
    %p51 = scmp.eq.s32.totalorder %s11, 0
    %p52 = por %p50, %p51
    %p53 = scmp.ne.s32.totalorder %s45, %s47
    %p54 = scmp.eq.s32.totalorder %s16, 1
    %p55 = por %p53, %p54
    %p56 = scmp.ne.s32.totalorder %s47, %s48
    %p57 = scmp.eq.s32.totalorder %s16, 0
    %p58 = por %p56, %p57
    %p59 = scmp.ne.s32.totalorder %s47, %s48
    %p60 = scmp.eq.s32.totalorder %s17, 1
    %p61 = por %p59, %p60
    %p63 = scmp.ne.s32.totalorder %s48, %s62
    %p64 = scmp.eq.s32.totalorder %s17, 0
    %p65 = por %p63, %p64
    %s67 = sadd.s32 %s66, 1
    %p70 = scmp.eq.s32.totalorder %s11, 1
    %p71 = scmp.ne.s32.totalorder %s66, %s68
    %p72 = scmp.eq.s32.totalorder %s11, 0
    %p73 = por %p71, %p72
    %p74 = scmp.ne.s32.totalorder %s66, %s68
    %p75 = scmp.eq.s32.totalorder %s16, 1
    %p76 = por %p74, %p75
    %p77 = scmp.ne.s32.totalorder %s68, %s69
    %p78 = scmp.eq.s32.totalorder %s16, 0
    %p79 = por %p77, %p78
    %p80 = scmp.ne.s32.totalorder %s68, %s69
    %p81 = scmp.eq.s32.totalorder %s17, 1
    %p82 = por %p80, %p81
    %p84 = scmp.ne.s32.totalorder %s69, %s83
    %p85 = scmp.eq.s32.totalorder %s17, 0
    %p86 = por %p84, %p85
    %s88 = sadd.s32 %s87, 1
    %p91 = scmp.eq.s32.totalorder %s11, 1
    %p92 = scmp.ne.s32.totalorder %s87, %s89
    %p93 = scmp.eq.s32.totalorder %s11, 0
    %p94 = por %p92, %p93
    %p95 = scmp.ne.s32.totalorder %s87, %s89
    %p96 = scmp.eq.s32.totalorder %s16, 1
    %p97 = por %p95, %p96
    %p98 = scmp.ne.s32.totalorder %s89, %s90
    %p99 = scmp.eq.s32.totalorder %s16, 0
    %p100 = por %p98, %p99
    %p101 = scmp.ne.s32.totalorder %s89, %s90
    %p102 = scmp.eq.s32.totalorder %s17, 1
    %p103 = por %p101, %p102
    %p105 = scmp.ne.s32.totalorder %s90, %s104
    %p106 = scmp.eq.s32.totalorder %s17, 0
    %p107 = por %p105, %p106
    %s109 = sadd.s32 %s108, 1
    %p112 = scmp.eq.s32.totalorder %s11, 1
    %p113 = scmp.ne.s32.totalorder %s108, %s110
    %p114 = scmp.eq.s32.totalorder %s11, 0
    %p115 = por %p113, %p114
    %p116 = scmp.ne.s32.totalorder %s108, %s110
    %p117 = scmp.eq.s32.totalorder %s16, 1
    %p118 = por %p116, %p117
    %p119 = scmp.ne.s32.totalorder %s110, %s111
    %p120 = scmp.eq.s32.totalorder %s16, 0
    %p121 = por %p119, %p120
    %p122 = scmp.ne.s32.totalorder %s110, %s111
    %p123 = scmp.eq.s32.totalorder %s17, 1
    %p124 = por %p122, %p123
    %p126 = scmp.ne.s32.totalorder %s111, %s125
    %p127 = scmp.eq.s32.totalorder %s17, 0
    %p128 = por %p126, %p127
    %s129 = ssub.s32 %s11, %s18
    %p130 = scmp.eq.s32.totalorder %s129, 0
    %s132 = sadd.s32 %s131, 1
    %s133 = scalar_select %p130, %s131, %s132
    %p136 = pneg %p130
    %p137 = scmp.eq.s32.totalorder %s11, 1
    %p138 = por %p136, %p137
    %p139 = scmp.ne.s32.totalorder %s131, %s134
    %p140 = scmp.eq.s32.totalorder %s11, 0
    %p141 = por %p139, %p140
    %p142 = scmp.ne.s32.totalorder %s131, %s134
    %p143 = scmp.eq.s32.totalorder %s16, 1
    %p144 = por %p142, %p143
    %p145 = scmp.ne.s32.totalorder %s134, %s135
    %p146 = scmp.eq.s32.totalorder %s16, 0
    %p147 = por %p145, %p146
    %p148 = scmp.ne.s32.totalorder %s134, %s135
    %p149 = scmp.eq.s32.totalorder %s17, 1
    %p150 = por %p148, %p149
    %p152 = scmp.ne.s32.totalorder %s135, %s151
    %p153 = scmp.eq.s32.totalorder %s17, 0
    %p154 = por %p152, %p153
    %p155 = scmp.le.s32.totalorder 1, %s11
    %p156 = scmp.lt.s32.totalorder %s11, 3
    %p157 = pnand %p155, %p156
    %p158 = pneg %p157
    // Predicated region
    $region9: #{tpu_custom_call.1} parent=5 // pred_check
      _
    $region10: #{tpu_custom_call.1} parent=5 // pred_check_branch
      %160 = sbr.rel (%p157) target = $region12
    $region11: #{tpu_custom_call.1} parent=5 // pred_region
      %s161 = ssub.s32 %s11, 1
      // Predicated region
      $region13: #{tpu_custom_call.1} parent=11 // pred_check
        %p162 = pneg %p58
      $region14: #{tpu_custom_call.1} parent=11 // pred_check_branch
        %164 = sbr.rel (%p162) target = $region16
      $region15: #{tpu_custom_call.1} parent=11 // pred_region
        _
      $region16: #{tpu_custom_call.1} parent=11 // pred_fallthru
        _
      // Predicated region
      $region17: #{tpu_custom_call.1} parent=11 // pred_check
        %p165 = pneg %p79
      $region18: #{tpu_custom_call.1} parent=11 // pred_check_branch
        %167 = sbr.rel (%p165) target = $region20
      $region19: #{tpu_custom_call.1} parent=11 // pred_region
        _
      $region20: #{tpu_custom_call.1} parent=11 // pred_fallthru
        _
      // Predicated region
      $region21: #{tpu_custom_call.1} parent=11 // pred_check
        %p168 = pneg %p100
      $region22: #{tpu_custom_call.1} parent=11 // pred_check_branch
        %170 = sbr.rel (%p168) target = $region24
      $region23: #{tpu_custom_call.1} parent=11 // pred_region
        _
      $region24: #{tpu_custom_call.1} parent=11 // pred_fallthru
        _
      // Predicated region
      $region25: #{tpu_custom_call.1} parent=11 // pred_check
        %p171 = pneg %p121
      $region26: #{tpu_custom_call.1} parent=11 // pred_check_branch
        %173 = sbr.rel (%p171) target = $region28
      $region27: #{tpu_custom_call.1} parent=11 // pred_region
        _
      $region28: #{tpu_custom_call.1} parent=11 // pred_fallthru
        _
    $region12: #{tpu_custom_call.1} parent=5 // pred_fallthru
      _
    %p174 = scmp.lt.s32.totalorder %s11, 2
    // Predicated region
    $region29: #{tpu_custom_call.1} parent=5 // pred_check
      %p175 = pneg %p174
    $region30: #{tpu_custom_call.1} parent=5 // pred_check_branch
      %177 = sbr.rel (%p175) target = $region32
    $region31: #{tpu_custom_call.1} parent=5 // pred_region
      // Predicated region
      $region33: #{tpu_custom_call.1} parent=31 // pred_check
        %p178 = pneg %p31
      $region34: #{tpu_custom_call.1} parent=31 // pred_check_branch
        %180 = sbr.rel (%p178) target = $region36
      $region35: #{tpu_custom_call.1} parent=31 // pred_region
        %s181 = smul.u32 16, %s11
        %p182 = scmp.lt.s32.totalorder %s181, 31
        %s183 = scalar_select %p182, %s181, 31
        %s184 = smul.addr %s183, 8
        %s185 = scalar_lea.vmem %s0, %s184
        %s186 = smul.u32 16, %s11
      $region36: #{tpu_custom_call.1} parent=31 // pred_fallthru
        _
    $region32: #{tpu_custom_call.1} parent=5 // pred_fallthru
      _
    %p187 = scmp.le.s32.totalorder 1, %s11
    %p188 = scmp.lt.s32.totalorder %s11, 3
    %p189 = pnand %p187, %p188
    %p190 = pneg %p189
    // Predicated region
    $region37: #{tpu_custom_call.1} parent=5 // pred_check
      _
    $region38: #{tpu_custom_call.1} parent=5 // pred_check_branch
      %192 = sbr.rel (%p189) target = $region40
    $region39: #{tpu_custom_call.1} parent=5 // pred_region
      %s193 = ssub.s32 %s11, 1
      %s194 = smul.u32 16, %s16
      %p195 = scmp.lt.s32.totalorder %s194, 31
      %s196 = scalar_select %p195, %s194, 31
      %s197 = smul.addr %s196, 8
      %s198 = scalar_lea.vmem %s0, %s197
      %p199 = pneg %p37
      %p200 = pneg %p34
      %p201 = pneg %p58
      %p202 = pneg %p55
      %p203 = pneg %p79
      %p204 = pneg %p76
      %p205 = pneg %p100
      %p206 = pneg %p97
      %p207 = pneg %p121
      %p208 = pneg %p118
      %p209 = pneg %p147
      %p210 = pneg %p144
      %s211 = smul.u32 16, %s16
      %p212 = scmp.lt.s32.totalorder %s211, 31
      %s213 = scalar_select %p212, %s211, 31
      %s214 = smul.addr %s213, 8
      %s215 = scalar_lea.vmem %s5, %s214
      %s216 = smul.u32 16, %s16
      %p217 = scmp.lt.s32.totalorder %s216, 31
      %s218 = scalar_select %p217, %s216, 31
      %s219 = smul.addr %s218, 8
      %s220 = scalar_lea.vmem %s0, %s219
      %s221 = smul.u32 16, %s16
      %s222 = smul.u32 16, %s16
      %p223 = scmp.lt.s32.totalorder %s222, 31
      %s224 = scalar_select %p223, %s222, 31
      %s225 = smul.addr %s224, 8
      %s226 = scalar_lea.vmem %s5, %s225
      %s227 = smul.u32 16, %s16
      %v228 = vld [vmem:[%s220] sm:$0xff]
      %v229 = vld [vmem:[%s220 + $0x8] sm:$0xff]
      %v230 = vld [vmem:[%s220 + $0x10] sm:$0xff]
      %v231 = vld [vmem:[%s220 + $0x18] sm:$0xff]
      %v232 = vld [vmem:[%s220 + $0x20] sm:$0xff]
      %v233 = vld [vmem:[%s220 + $0x28] sm:$0xff]
      %v234 = vld [vmem:[%s220 + $0x30] sm:$0xff]
      %v235 = vld [vmem:[%s220 + $0x38] sm:$0xff]
      %v236 = vld [vmem:[%s220 + $0x40] sm:$0xff]
      %v237 = vld [vmem:[%s220 + $0x48] sm:$0xff]
      %v238 = vld [vmem:[%s220 + $0x50] sm:$0xff]
      %v239 = vld [vmem:[%s220 + $0x58] sm:$0xff]
      %v240 = vld [vmem:[%s220 + $0x60] sm:$0xff]
      %v241 = vld [vmem:[%s220 + $0x68] sm:$0xff]
      %v242 = vld [vmem:[%s220 + $0x70] sm:$0xff]
      %v243 = vld [vmem:[%s220 + $0x78] sm:$0xff]
      %v244 = vld [vmem:[%s1] sm:$0xff]
      %v245 = vld [vmem:[%s1 + $0x8] sm:$0xff]
      %v246 = vld [vmem:[%s1 + $0x10] sm:$0xff]
      %v247 = vld [vmem:[%s1 + $0x18] sm:$0xff]
      %v248 = vld [vmem:[%s2] sm:$0x1]
      %v250 = vperm.slane %v248, 0
      %vm252 = vcmask 261120
      %v254 = vsel %vm252, %v228, 0
      %v257 = vsel %vm252, %v229, 0
      %v260 = vsel %vm252, %v230, 0
      %v263 = vsel %vm252, %v231, 0
      %v266 = vsel %vm252, %v232, 0
      %v269 = vsel %vm252, %v233, 0
      %v272 = vsel %vm252, %v234, 0
      %v275 = vsel %vm252, %v235, 0
      %v278 = vsel %vm252, %v236, 0
      %v281 = vsel %vm252, %v237, 0
      %v284 = vsel %vm252, %v238, 0
      %v287 = vsel %vm252, %v239, 0
      %v290 = vsel %vm252, %v240, 0
      %v293 = vsel %vm252, %v241, 0
      %v296 = vsel %vm252, %v242, 0
      %v299 = vsel %vm252, %v243, 0
      %301 = vmatpush.msra.mxu0 0.0
      %302 = vmatpush.msra.mxu0 0.0
      %303 = vmatpush.msra.mxu0 0.0
      %304 = vmatpush.msra.mxu0 0.0
      %305 = vmatpush.msra.mxu0 0.0
      %306 = vmatpush.msra.mxu0 0.0
      %307 = vmatpush.msra.mxu0 0.0
      %308 = vmatpush.msra.mxu0 0.0
      %309 = vmatpush.msra.mxu0 0.0
      %310 = vmatpush.msra.mxu0 0.0
      %311 = vmatpush.msra.mxu0 0.0
      %312 = vmatpush.msra.mxu0 0.0
      %313 = vmatpush.msra.mxu0 %v247
      %314 = vmatpush.msra.mxu0 %v246
      %315 = vmatpush.msra.mxu0 %v245
      %316 = vmatpush.msra.mxu0 %v244
      %317 = vmatmul.f32.gmra.mxu0 %v254
      %v318 = vpop.f32.mrf.mxu0
      %v319 = vadd.f32 %v250, %v318
      %320 = vmatmul.f32.gmra.mxu0 %v257
      %v321 = vpop.f32.mrf.mxu0
      %v322 = vadd.f32 %v250, %v321
      %323 = vmatmul.f32.gmra.mxu0 %v260
      %v324 = vpop.f32.mrf.mxu0
      %v325 = vadd.f32 %v250, %v324
      %326 = vmatmul.f32.gmra.mxu0 %v263
      %v327 = vpop.f32.mrf.mxu0
      %v328 = vadd.f32 %v250, %v327
      %329 = vmatmul.f32.gmra.mxu0 %v266
      %v330 = vpop.f32.mrf.mxu0
      %v331 = vadd.f32 %v250, %v330
      %332 = vmatmul.f32.gmra.mxu0 %v269
      %v333 = vpop.f32.mrf.mxu0
      %v334 = vadd.f32 %v250, %v333
      %335 = vmatmul.f32.gmra.mxu0 %v272
      %v336 = vpop.f32.mrf.mxu0
      %v337 = vadd.f32 %v250, %v336
      %338 = vmatmul.f32.gmra.mxu0 %v275
      %v339 = vpop.f32.mrf.mxu0
      %v340 = vadd.f32 %v250, %v339
      %341 = vmatmul.f32.gmra.mxu0 %v278
      %v342 = vpop.f32.mrf.mxu0
      %v343 = vadd.f32 %v250, %v342
      %344 = vmatmul.f32.gmra.mxu0 %v281
      %v345 = vpop.f32.mrf.mxu0
      %v346 = vadd.f32 %v250, %v345
      %347 = vmatmul.f32.gmra.mxu0 %v284
      %v348 = vpop.f32.mrf.mxu0
      %v349 = vadd.f32 %v250, %v348
      %350 = vmatmul.f32.gmra.mxu0 %v287
      %v351 = vpop.f32.mrf.mxu0
      %v352 = vadd.f32 %v250, %v351
      %353 = vmatmul.f32.gmra.mxu0 %v290
      %v354 = vpop.f32.mrf.mxu0
      %v355 = vadd.f32 %v250, %v354
      %356 = vmatmul.f32.gmra.mxu0 %v293
      %v357 = vpop.f32.mrf.mxu0
      %v358 = vadd.f32 %v250, %v357
      %359 = vmatmul.f32.gmra.mxu0 %v296
      %v360 = vpop.f32.mrf.mxu0
      %v361 = vadd.f32 %v250, %v360
      %362 = vmatmul.f32.gmra.mxu0 %v299
      %v363 = vpop.f32.mrf.mxu0
      %v364 = vadd.f32 %v250, %v363
      %365 = vdwg.mxu0
      %v366 = vmax.f32 %v319, 0.0
      %v367 = vmax.f32 %v322, 0.0
      %v368 = vmax.f32 %v325, 0.0
      %v369 = vmax.f32 %v328, 0.0
      %v370 = vmax.f32 %v331, 0.0
      %v371 = vmax.f32 %v334, 0.0
      %v372 = vmax.f32 %v337, 0.0
      %v373 = vmax.f32 %v340, 0.0
      %v374 = vmax.f32 %v343, 0.0
      %v375 = vmax.f32 %v346, 0.0
      %v376 = vmax.f32 %v349, 0.0
      %v377 = vmax.f32 %v352, 0.0
      %v378 = vmax.f32 %v355, 0.0
      %v379 = vmax.f32 %v358, 0.0
      %v380 = vmax.f32 %v361, 0.0
      %v381 = vmax.f32 %v364, 0.0
      %v382 = vld [vmem:[%s3] sm:$0xff]
      %v383 = vld [vmem:[%s3 + $0x8] sm:$0xff]
      %v384 = vld [vmem:[%s3 + $0x10] sm:$0xff]
      %v385 = vld [vmem:[%s3 + $0x18] sm:$0xff]
      %v386 = vld [vmem:[%s3 + $0x20] sm:$0xff]
      %v387 = vld [vmem:[%s3 + $0x28] sm:$0xff]
      %v388 = vld [vmem:[%s3 + $0x30] sm:$0xff]
      %v389 = vld [vmem:[%s3 + $0x38] sm:$0xff]
      %v390 = vld [vmem:[%s3 + $0x40] sm:$0xff]
      %v391 = vld [vmem:[%s3 + $0x48] sm:$0xff]
      %v392 = vld [vmem:[%s3 + $0x50] sm:$0xff]
      %v393 = vld [vmem:[%s3 + $0x58] sm:$0xff]
      %v394 = vld [vmem:[%s3 + $0x60] sm:$0xff]
      %v395 = vld [vmem:[%s3 + $0x68] sm:$0xff]
      %v396 = vld [vmem:[%s3 + $0x70] sm:$0xff]
      %v397 = vld [vmem:[%s3 + $0x78] sm:$0xff]
      %v398 = vld [vmem:[%s4] sm:$0x1]
      %v400 = vperm.slane %v398, 0
      %402 = vmatpush.msra.mxu0 %v397
      %403 = vmatpush.msra.mxu0 %v396
      %404 = vmatpush.msra.mxu0 %v395
      %405 = vmatpush.msra.mxu0 %v394
      %406 = vmatpush.msra.mxu0 %v393
      %407 = vmatpush.msra.mxu0 %v392
      %408 = vmatpush.msra.mxu0 %v391
      %409 = vmatpush.msra.mxu0 %v390
      %410 = vmatpush.msra.mxu0 %v389
      %411 = vmatpush.msra.mxu0 %v388
      %412 = vmatpush.msra.mxu0 %v387
      %413 = vmatpush.msra.mxu0 %v386
      %414 = vmatpush.msra.mxu0 %v385
      %415 = vmatpush.msra.mxu0 %v384
      %416 = vmatpush.msra.mxu0 %v383
      %417 = vmatpush.msra.mxu0 %v382
      %418 = vmatmul.f32.gmra.mxu0 %v366
      %v419 = vpop.f32.mrf.mxu0
      %v420 = vadd.f32 %v400, %v419
      %421 = vmatmul.f32.gmra.mxu0 %v367
      %v422 = vpop.f32.mrf.mxu0
      %v423 = vadd.f32 %v400, %v422
      %424 = vmatmul.f32.gmra.mxu0 %v368
      %v425 = vpop.f32.mrf.mxu0
      %v426 = vadd.f32 %v400, %v425
      %427 = vmatmul.f32.gmra.mxu0 %v369
      %v428 = vpop.f32.mrf.mxu0
      %v429 = vadd.f32 %v400, %v428
      %430 = vmatmul.f32.gmra.mxu0 %v370
      %v431 = vpop.f32.mrf.mxu0
      %v432 = vadd.f32 %v400, %v431
      %433 = vmatmul.f32.gmra.mxu0 %v371
      %v434 = vpop.f32.mrf.mxu0
      %v435 = vadd.f32 %v400, %v434
      %436 = vmatmul.f32.gmra.mxu0 %v372
      %v437 = vpop.f32.mrf.mxu0
      %v438 = vadd.f32 %v400, %v437
      %439 = vmatmul.f32.gmra.mxu0 %v373
      %v440 = vpop.f32.mrf.mxu0
      %v441 = vadd.f32 %v400, %v440
      %442 = vmatmul.f32.gmra.mxu0 %v374
      %v443 = vpop.f32.mrf.mxu0
      %v444 = vadd.f32 %v400, %v443
      %445 = vmatmul.f32.gmra.mxu0 %v375
      %v446 = vpop.f32.mrf.mxu0
      %v447 = vadd.f32 %v400, %v446
      %448 = vmatmul.f32.gmra.mxu0 %v376
      %v449 = vpop.f32.mrf.mxu0
      %v450 = vadd.f32 %v400, %v449
      %451 = vmatmul.f32.gmra.mxu0 %v377
      %v452 = vpop.f32.mrf.mxu0
      %v453 = vadd.f32 %v400, %v452
      %454 = vmatmul.f32.gmra.mxu0 %v378
      %v455 = vpop.f32.mrf.mxu0
      %v456 = vadd.f32 %v400, %v455
      %457 = vmatmul.f32.gmra.mxu0 %v379
      %v458 = vpop.f32.mrf.mxu0
      %v459 = vadd.f32 %v400, %v458
      %460 = vmatmul.f32.gmra.mxu0 %v380
      %v461 = vpop.f32.mrf.mxu0
      %v462 = vadd.f32 %v400, %v461
      %463 = vmatmul.f32.gmra.mxu0 %v381
      %v464 = vpop.f32.mrf.mxu0
      %v465 = vadd.f32 %v400, %v464
      %466 = vdwg.mxu0
      %vm467 = vcmask 130048
      %v468 = vsel %vm467, %v420, -inf
      %469 = vmax.xlane.f32.xlu0 %v468
      %v470 = vpop.xlane.xlu0 %469
      %v471 = vsel %vm467, %v423, -inf
      %472 = vmax.xlane.f32.xlu0 %v471
      %v473 = vpop.xlane.xlu0 %472
      %v474 = vsel %vm467, %v426, -inf
      %475 = vmax.xlane.f32.xlu0 %v474
      %v476 = vpop.xlane.xlu0 %475
      %v477 = vsel %vm467, %v429, -inf
      %478 = vmax.xlane.f32.xlu0 %v477
      %v479 = vpop.xlane.xlu0 %478
      %v480 = vsel %vm467, %v432, -inf
      %481 = vmax.xlane.f32.xlu0 %v480
      %v482 = vpop.xlane.xlu0 %481
      %v483 = vsel %vm467, %v435, -inf
      %484 = vmax.xlane.f32.xlu0 %v483
      %v485 = vpop.xlane.xlu0 %484
      %v486 = vsel %vm467, %v438, -inf
      %487 = vmax.xlane.f32.xlu0 %v486
      %v488 = vpop.xlane.xlu0 %487
      %v489 = vsel %vm467, %v441, -inf
      %490 = vmax.xlane.f32.xlu0 %v489
      %v491 = vpop.xlane.xlu0 %490
      %v492 = vsel %vm467, %v444, -inf
      %493 = vmax.xlane.f32.xlu0 %v492
      %v494 = vpop.xlane.xlu0 %493
      %v495 = vsel %vm467, %v447, -inf
      %496 = vmax.xlane.f32.xlu0 %v495
      %v497 = vpop.xlane.xlu0 %496
      %v498 = vsel %vm467, %v450, -inf
      %499 = vmax.xlane.f32.xlu0 %v498
      %v500 = vpop.xlane.xlu0 %499
      %v501 = vsel %vm467, %v453, -inf
      %502 = vmax.xlane.f32.xlu0 %v501
      %v503 = vpop.xlane.xlu0 %502
      %v504 = vsel %vm467, %v456, -inf
      %505 = vmax.xlane.f32.xlu0 %v504
      %v506 = vpop.xlane.xlu0 %505
      %v507 = vsel %vm467, %v459, -inf
      %508 = vmax.xlane.f32.xlu0 %v507
      %v509 = vpop.xlane.xlu0 %508
      %v510 = vsel %vm467, %v462, -inf
      %511 = vmax.xlane.f32.xlu0 %v510
      %v512 = vpop.xlane.xlu0 %511
      %v513 = vsel %vm467, %v465, -inf
      %514 = vmax.xlane.f32.xlu0 %v513
      %v515 = vpop.xlane.xlu0 %514
      %v516 = vsub.f32 %v420, %v470
      %v517 = vsub.f32 %v423, %v473
      %v518 = vsub.f32 %v426, %v476
      %v519 = vsub.f32 %v429, %v479
      %v520 = vsub.f32 %v432, %v482
      %v521 = vsub.f32 %v435, %v485
      %v522 = vsub.f32 %v438, %v488
      %v523 = vsub.f32 %v441, %v491
      %v524 = vsub.f32 %v444, %v494
      %v525 = vsub.f32 %v447, %v497
      %v526 = vsub.f32 %v450, %v500
      %v527 = vsub.f32 %v453, %v503
      %v528 = vsub.f32 %v456, %v506
      %v529 = vsub.f32 %v459, %v509
      %v530 = vsub.f32 %v462, %v512
      %v531 = vsub.f32 %v465, %v515
      %v532 = vmul.f32 %v516, 1.442695
      %v533 = vpow.pop %v532
      %v534 = vmul.f32 %v517, 1.442695
      %v535 = vpow.pop %v534
      %v536 = vmul.f32 %v518, 1.442695
      %v537 = vpow.pop %v536
      %v538 = vmul.f32 %v519, 1.442695
      %v539 = vpow.pop %v538
      %v540 = vmul.f32 %v520, 1.442695
      %v541 = vpow.pop %v540
      %v542 = vmul.f32 %v521, 1.442695
      %v543 = vpow.pop %v542
      %v544 = vmul.f32 %v522, 1.442695
      %v545 = vpow.pop %v544
      %v546 = vmul.f32 %v523, 1.442695
      %v547 = vpow.pop %v546
      %v548 = vmul.f32 %v524, 1.442695
      %v549 = vpow.pop %v548
      %v550 = vmul.f32 %v525, 1.442695
      %v551 = vpow.pop %v550
      %v552 = vmul.f32 %v526, 1.442695
      %v553 = vpow.pop %v552
      %v554 = vmul.f32 %v527, 1.442695
      %v555 = vpow.pop %v554
      %v556 = vmul.f32 %v528, 1.442695
      %v557 = vpow.pop %v556
      %v558 = vmul.f32 %v529, 1.442695
      %v559 = vpow.pop %v558
      %v560 = vmul.f32 %v530, 1.442695
      %v561 = vpow.pop %v560
      %v562 = vmul.f32 %v531, 1.442695
      %v563 = vpow.pop %v562
      %v564 = vsel %vm467, %v533, 0.0
      %565 = vadd.xlane.f32.xlu0 %v564
      %v566 = vpop.xlane.xlu0 %565
      %v567 = vsel %vm467, %v535, 0.0
      %568 = vadd.xlane.f32.xlu0 %v567
      %v569 = vpop.xlane.xlu0 %568
      %v570 = vsel %vm467, %v537, 0.0
      %571 = vadd.xlane.f32.xlu0 %v570
      %v572 = vpop.xlane.xlu0 %571
      %v573 = vsel %vm467, %v539, 0.0
      %574 = vadd.xlane.f32.xlu0 %v573
      %v575 = vpop.xlane.xlu0 %574
      %v576 = vsel %vm467, %v541, 0.0
      %577 = vadd.xlane.f32.xlu0 %v576
      %v578 = vpop.xlane.xlu0 %577
      %v579 = vsel %vm467, %v543, 0.0
      %580 = vadd.xlane.f32.xlu0 %v579
      %v581 = vpop.xlane.xlu0 %580
      %v582 = vsel %vm467, %v545, 0.0
      %583 = vadd.xlane.f32.xlu0 %v582
      %v584 = vpop.xlane.xlu0 %583
      %v585 = vsel %vm467, %v547, 0.0
      %586 = vadd.xlane.f32.xlu0 %v585
      %v587 = vpop.xlane.xlu0 %586
      %v588 = vsel %vm467, %v549, 0.0
      %589 = vadd.xlane.f32.xlu0 %v588
      %v590 = vpop.xlane.xlu0 %589
      %v591 = vsel %vm467, %v551, 0.0
      %592 = vadd.xlane.f32.xlu0 %v591
      %v593 = vpop.xlane.xlu0 %592
      %v594 = vsel %vm467, %v553, 0.0
      %595 = vadd.xlane.f32.xlu0 %v594
      %v596 = vpop.xlane.xlu0 %595
      %v597 = vsel %vm467, %v555, 0.0
      %598 = vadd.xlane.f32.xlu0 %v597
      %v599 = vpop.xlane.xlu0 %598
      %v600 = vsel %vm467, %v557, 0.0
      %601 = vadd.xlane.f32.xlu0 %v600
      %v602 = vpop.xlane.xlu0 %601
      %v603 = vsel %vm467, %v559, 0.0
      %604 = vadd.xlane.f32.xlu0 %v603
      %v605 = vpop.xlane.xlu0 %604
      %v606 = vsel %vm467, %v561, 0.0
      %607 = vadd.xlane.f32.xlu0 %v606
      %v608 = vpop.xlane.xlu0 %607
      %v609 = vsel %vm467, %v563, 0.0
      %610 = vadd.xlane.f32.xlu0 %v609
      %v611 = vpop.xlane.xlu0 %610
      %v612 = vrcp.pop %v566
      %v613 = vmul.f32 %v566, %v612
      %v614 = vsub.f32 1.0, %v613
      %v615 = vmul.f32 %v612, %v614
      %v616 = vadd.f32 %v612, %v615
      %vm617 = vweird.f32 %v566
      %vm618 = vweird.f32 %v612
      %vm619 = vmor %vm617, %vm618
      %v620 = vsel %vm619, %v612, %v616
      %v621 = vand.u32 2147483647, %v566
      %vm622 = vcmp.eq.f32.partialorder %v621, 8.507059e+37
      %v623 = vand.u32 %v566, 2147483648
      %v624 = vor.u32 1.1754944e-38, %v623
      %v625 = vsel %vm622, %v624, %v620
      %v626 = vmul.f32 %v533, %v625
      %v627 = vrcp.pop %v569
      %v628 = vmul.f32 %v569, %v627
      %v629 = vsub.f32 1.0, %v628
      %v630 = vmul.f32 %v627, %v629
      %v631 = vadd.f32 %v627, %v630
      %vm632 = vweird.f32 %v569
      %vm633 = vweird.f32 %v627
      %vm634 = vmor %vm632, %vm633
      %v635 = vsel %vm634, %v627, %v631
      %v636 = vand.u32 2147483647, %v569
      %vm637 = vcmp.eq.f32.partialorder %v636, 8.507059e+37
      %v638 = vand.u32 %v569, 2147483648
      %v639 = vor.u32 1.1754944e-38, %v638
      %v640 = vsel %vm637, %v639, %v635
      %v641 = vmul.f32 %v535, %v640
      %v642 = vrcp.pop %v572
      %v643 = vmul.f32 %v572, %v642
      %v644 = vsub.f32 1.0, %v643
      %v645 = vmul.f32 %v642, %v644
      %v646 = vadd.f32 %v642, %v645
      %vm647 = vweird.f32 %v572
      %vm648 = vweird.f32 %v642
      %vm649 = vmor %vm647, %vm648
      %v650 = vsel %vm649, %v642, %v646
      %v651 = vand.u32 2147483647, %v572
      %vm652 = vcmp.eq.f32.partialorder %v651, 8.507059e+37
      %v653 = vand.u32 %v572, 2147483648
      %v654 = vor.u32 1.1754944e-38, %v653
      %v655 = vsel %vm652, %v654, %v650
      %v656 = vmul.f32 %v537, %v655
      %v657 = vrcp.pop %v575
      %v658 = vmul.f32 %v575, %v657
      %v659 = vsub.f32 1.0, %v658
      %v660 = vmul.f32 %v657, %v659
      %v661 = vadd.f32 %v657, %v660
      %vm662 = vweird.f32 %v575
      %vm663 = vweird.f32 %v657
      %vm664 = vmor %vm662, %vm663
      %v665 = vsel %vm664, %v657, %v661
      %v666 = vand.u32 2147483647, %v575
      %vm667 = vcmp.eq.f32.partialorder %v666, 8.507059e+37
      %v668 = vand.u32 %v575, 2147483648
      %v669 = vor.u32 1.1754944e-38, %v668
      %v670 = vsel %vm667, %v669, %v665
      %v671 = vmul.f32 %v539, %v670
      %v672 = vrcp.pop %v578
      %v673 = vmul.f32 %v578, %v672
      %v674 = vsub.f32 1.0, %v673
      %v675 = vmul.f32 %v672, %v674
      %v676 = vadd.f32 %v672, %v675
      %vm677 = vweird.f32 %v578
      %vm678 = vweird.f32 %v672
      %vm679 = vmor %vm677, %vm678
      %v680 = vsel %vm679, %v672, %v676
      %v681 = vand.u32 2147483647, %v578
      %vm682 = vcmp.eq.f32.partialorder %v681, 8.507059e+37
      %v683 = vand.u32 %v578, 2147483648
      %v684 = vor.u32 1.1754944e-38, %v683
      %v685 = vsel %vm682, %v684, %v680
      %v686 = vmul.f32 %v541, %v685
      %v687 = vrcp.pop %v581
      %v688 = vmul.f32 %v581, %v687
      %v689 = vsub.f32 1.0, %v688
      %v690 = vmul.f32 %v687, %v689
      %v691 = vadd.f32 %v687, %v690
      %vm692 = vweird.f32 %v581
      %vm693 = vweird.f32 %v687
      %vm694 = vmor %vm692, %vm693
      %v695 = vsel %vm694, %v687, %v691
      %v696 = vand.u32 2147483647, %v581
      %vm697 = vcmp.eq.f32.partialorder %v696, 8.507059e+37
      %v698 = vand.u32 %v581, 2147483648
      %v699 = vor.u32 1.1754944e-38, %v698
      %v700 = vsel %vm697, %v699, %v695
      %v701 = vmul.f32 %v543, %v700
      %v702 = vrcp.pop %v584
      %v703 = vmul.f32 %v584, %v702
      %v704 = vsub.f32 1.0, %v703
      %v705 = vmul.f32 %v702, %v704
      %v706 = vadd.f32 %v702, %v705
      %vm707 = vweird.f32 %v584
      %vm708 = vweird.f32 %v702
      %vm709 = vmor %vm707, %vm708
      %v710 = vsel %vm709, %v702, %v706
      %v711 = vand.u32 2147483647, %v584
      %vm712 = vcmp.eq.f32.partialorder %v711, 8.507059e+37
      %v713 = vand.u32 %v584, 2147483648
      %v714 = vor.u32 1.1754944e-38, %v713
      %v715 = vsel %vm712, %v714, %v710
      %v716 = vmul.f32 %v545, %v715
      %v717 = vrcp.pop %v587
      %v718 = vmul.f32 %v587, %v717
      %v719 = vsub.f32 1.0, %v718
      %v720 = vmul.f32 %v717, %v719
      %v721 = vadd.f32 %v717, %v720
      %vm722 = vweird.f32 %v587
      %vm723 = vweird.f32 %v717
      %vm724 = vmor %vm722, %vm723
      %v725 = vsel %vm724, %v717, %v721
      %v726 = vand.u32 2147483647, %v587
      %vm727 = vcmp.eq.f32.partialorder %v726, 8.507059e+37
      %v728 = vand.u32 %v587, 2147483648
      %v729 = vor.u32 1.1754944e-38, %v728
      %v730 = vsel %vm727, %v729, %v725
      %v731 = vmul.f32 %v547, %v730
      %v732 = vrcp.pop %v590
      %v733 = vmul.f32 %v590, %v732
      %v734 = vsub.f32 1.0, %v733
      %v735 = vmul.f32 %v732, %v734
      %v736 = vadd.f32 %v732, %v735
      %vm737 = vweird.f32 %v590
      %vm738 = vweird.f32 %v732
      %vm739 = vmor %vm737, %vm738
      %v740 = vsel %vm739, %v732, %v736
      %v741 = vand.u32 2147483647, %v590
      %vm742 = vcmp.eq.f32.partialorder %v741, 8.507059e+37
      %v743 = vand.u32 %v590, 2147483648
      %v744 = vor.u32 1.1754944e-38, %v743
      %v745 = vsel %vm742, %v744, %v740
      %v746 = vmul.f32 %v549, %v745
      %v747 = vrcp.pop %v593
      %v748 = vmul.f32 %v593, %v747
      %v749 = vsub.f32 1.0, %v748
      %v750 = vmul.f32 %v747, %v749
      %v751 = vadd.f32 %v747, %v750
      %vm752 = vweird.f32 %v593
      %vm753 = vweird.f32 %v747
      %vm754 = vmor %vm752, %vm753
      %v755 = vsel %vm754, %v747, %v751
      %v756 = vand.u32 2147483647, %v593
      %vm757 = vcmp.eq.f32.partialorder %v756, 8.507059e+37
      %v758 = vand.u32 %v593, 2147483648
      %v759 = vor.u32 1.1754944e-38, %v758
      %v760 = vsel %vm757, %v759, %v755
      %v761 = vmul.f32 %v551, %v760
      %v762 = vrcp.pop %v596
      %v763 = vmul.f32 %v596, %v762
      %v764 = vsub.f32 1.0, %v763
      %v765 = vmul.f32 %v762, %v764
      %v766 = vadd.f32 %v762, %v765
      %vm767 = vweird.f32 %v596
      %vm768 = vweird.f32 %v762
      %vm769 = vmor %vm767, %vm768
      %v770 = vsel %vm769, %v762, %v766
      %v771 = vand.u32 2147483647, %v596
      %vm772 = vcmp.eq.f32.partialorder %v771, 8.507059e+37
      %v773 = vand.u32 %v596, 2147483648
      %v774 = vor.u32 1.1754944e-38, %v773
      %v775 = vsel %vm772, %v774, %v770
      %v776 = vmul.f32 %v553, %v775
      %v777 = vrcp.pop %v599
      %v778 = vmul.f32 %v599, %v777
      %v779 = vsub.f32 1.0, %v778
      %v780 = vmul.f32 %v777, %v779
      %v781 = vadd.f32 %v777, %v780
      %vm782 = vweird.f32 %v599
      %vm783 = vweird.f32 %v777
      %vm784 = vmor %vm782, %vm783
      %v785 = vsel %vm784, %v777, %v781
      %v786 = vand.u32 2147483647, %v599
      %vm787 = vcmp.eq.f32.partialorder %v786, 8.507059e+37
      %v788 = vand.u32 %v599, 2147483648
      %v789 = vor.u32 1.1754944e-38, %v788
      %v790 = vsel %vm787, %v789, %v785
      %v791 = vmul.f32 %v555, %v790
      %v792 = vrcp.pop %v602
      %v793 = vmul.f32 %v602, %v792
      %v794 = vsub.f32 1.0, %v793
      %v795 = vmul.f32 %v792, %v794
      %v796 = vadd.f32 %v792, %v795
      %vm797 = vweird.f32 %v602
      %vm798 = vweird.f32 %v792
      %vm799 = vmor %vm797, %vm798
      %v800 = vsel %vm799, %v792, %v796
      %v801 = vand.u32 2147483647, %v602
      %vm802 = vcmp.eq.f32.partialorder %v801, 8.507059e+37
      %v803 = vand.u32 %v602, 2147483648
      %v804 = vor.u32 1.1754944e-38, %v803
      %v805 = vsel %vm802, %v804, %v800
      %v806 = vmul.f32 %v557, %v805
      %v807 = vrcp.pop %v605
      %v808 = vmul.f32 %v605, %v807
      %v809 = vsub.f32 1.0, %v808
      %v810 = vmul.f32 %v807, %v809
      %v811 = vadd.f32 %v807, %v810
      %vm812 = vweird.f32 %v605
      %vm813 = vweird.f32 %v807
      %vm814 = vmor %vm812, %vm813
      %v815 = vsel %vm814, %v807, %v811
      %v816 = vand.u32 2147483647, %v605
      %vm817 = vcmp.eq.f32.partialorder %v816, 8.507059e+37
      %v818 = vand.u32 %v605, 2147483648
      %v819 = vor.u32 1.1754944e-38, %v818
      %v820 = vsel %vm817, %v819, %v815
      %v821 = vmul.f32 %v559, %v820
      %v822 = vrcp.pop %v608
      %v823 = vmul.f32 %v608, %v822
      %v824 = vsub.f32 1.0, %v823
      %v825 = vmul.f32 %v822, %v824
      %v826 = vadd.f32 %v822, %v825
      %vm827 = vweird.f32 %v608
      %vm828 = vweird.f32 %v822
      %vm829 = vmor %vm827, %vm828
      %v830 = vsel %vm829, %v822, %v826
      %v831 = vand.u32 2147483647, %v608
      %vm832 = vcmp.eq.f32.partialorder %v831, 8.507059e+37
      %v833 = vand.u32 %v608, 2147483648
      %v834 = vor.u32 1.1754944e-38, %v833
      %v835 = vsel %vm832, %v834, %v830
      %v836 = vmul.f32 %v561, %v835
      %v837 = vrcp.pop %v611
      %v838 = vmul.f32 %v611, %v837
      %v839 = vsub.f32 1.0, %v838
      %v840 = vmul.f32 %v837, %v839
      %v841 = vadd.f32 %v837, %v840
      %vm842 = vweird.f32 %v611
      %vm843 = vweird.f32 %v837
      %vm844 = vmor %vm842, %vm843
      %v845 = vsel %vm844, %v837, %v841
      %v846 = vand.u32 2147483647, %v611
      %vm847 = vcmp.eq.f32.partialorder %v846, 8.507059e+37
      %v848 = vand.u32 %v611, 2147483648
      %v849 = vor.u32 1.1754944e-38, %v848
      %v850 = vsel %vm847, %v849, %v845
      %v851 = vmul.f32 %v563, %v850
      %852 = vst.msk [vmem:[%s226] sm:$0xff] %vm467, %v626
      %853 = vst.msk [vmem:[%s226 + $0x8] sm:$0xff] %vm467, %v641
      %854 = vst.msk [vmem:[%s226 + $0x10] sm:$0xff] %vm467, %v656
      %855 = vst.msk [vmem:[%s226 + $0x18] sm:$0xff] %vm467, %v671
      %856 = vst.msk [vmem:[%s226 + $0x20] sm:$0xff] %vm467, %v686
      %857 = vst.msk [vmem:[%s226 + $0x28] sm:$0xff] %vm467, %v701
      %858 = vst.msk [vmem:[%s226 + $0x30] sm:$0xff] %vm467, %v716
      %859 = vst.msk [vmem:[%s226 + $0x38] sm:$0xff] %vm467, %v731
      %860 = vst.msk [vmem:[%s226 + $0x40] sm:$0xff] %vm467, %v746
      %861 = vst.msk [vmem:[%s226 + $0x48] sm:$0xff] %vm467, %v761
      %862 = vst.msk [vmem:[%s226 + $0x50] sm:$0xff] %vm467, %v776
      %863 = vst.msk [vmem:[%s226 + $0x58] sm:$0xff] %vm467, %v791
      %864 = vst.msk [vmem:[%s226 + $0x60] sm:$0xff] %vm467, %v806
      %865 = vst.msk [vmem:[%s226 + $0x68] sm:$0xff] %vm467, %v821
      %866 = vst.msk [vmem:[%s226 + $0x70] sm:$0xff] %vm467, %v836
      %867 = vst.msk [vmem:[%s226 + $0x78] sm:$0xff] %vm467, %v851
      %s868 = smul.u32 16, %s16
      %p869 = scmp.lt.s32.totalorder %s868, 31
      %s870 = scalar_select %p869, %s868, 31
      %s871 = smul.addr %s870, 8
      %s872 = scalar_lea.vmem %s5, %s871
      // Predicated region
      $region41: #{tpu_custom_call.1} parent=39 // pred_check
        %p873 = pneg %p144
      $region42: #{tpu_custom_call.1} parent=39 // pred_check_branch
        %875 = sbr.rel (%p873) target = $region44
      $region43: #{tpu_custom_call.1} parent=39 // pred_region
        %s876 = smul.u32 16, %s16
      $region44: #{tpu_custom_call.1} parent=39 // pred_fallthru
        _
    $region40: #{tpu_custom_call.1} parent=5 // pred_fallthru
      _
    %p877 = scmp.le.s32.totalorder 2, %s11
    // Predicated region
    $region45: #{tpu_custom_call.1} parent=5 // pred_check
      %p878 = pneg %p877
    $region46: #{tpu_custom_call.1} parent=5 // pred_check_branch
      %880 = sbr.rel (%p878) target = $region48
    $region47: #{tpu_custom_call.1} parent=5 // pred_region
      %s881 = ssub.s32 %s11, 2
      // Predicated region
      $region49: #{tpu_custom_call.1} parent=47 // pred_check
        %p882 = pneg %p150
      $region50: #{tpu_custom_call.1} parent=47 // pred_check_branch
        %884 = sbr.rel (%p882) target = $region52
      $region51: #{tpu_custom_call.1} parent=47 // pred_region
        %s885 = smul.u32 16, %s17
        %p886 = scmp.lt.s32.totalorder %s885, 31
        %s887 = scalar_select %p886, %s885, 31
        %s888 = smul.addr %s887, 8
        %s889 = scalar_lea.vmem %s5, %s888
      $region52: #{tpu_custom_call.1} parent=47 // pred_fallthru
        _
    $region48: #{tpu_custom_call.1} parent=5 // pred_fallthru
      _
  $region6: #{tpu_custom_call.1} parent=0 // loop_footer
    %s15 = sadd.s32 1, %s11
  $region7: #{tpu_custom_call.1} parent=0 // loop_footer_branch
    %10 = sbr.rel target = $region3
  $region8: #{tpu_custom_call.1} parent=0 // loop_exit
    _

</llo_original>
